<compile_context>
chip_gen: v7x
topology: tpu7x:2x2x1
jax: 0.10.0
libtpu: 0.0.40
codegen_flags: <defaults>
</compile_context>

<pallas_src>
import functools

import jax
import jax.numpy as jnp
from jax.experimental import pallas as pl
from jax.experimental.pallas import tpu as pltpu


def _round_up(v, m):
    return ((v + m - 1) // m) * m


def shortnet_kernel(
    x_ref,      # (2, TN)        transposed input tile (features on sublanes, batch on lanes)
    wstk_ref,   # (Mstk, 2)      stacked [w1 ; w2x ; w3x ; zero-pad]   (Mstk = roundup(2H+1, 8))
    bstk_ref,   # (Mstk, 1)      stacked [b1 ; b2  ; b3  ; zero-pad]
    w23_ref,    # (H23, H)       stacked [w2h ; w3h1 ; zero-pad]       (H23  = roundup(H+1, 8))
    w3h2_ref,   # (1, H)         fc3 weight columns for the h2 segment
    out_ref,    # (1, TN)        lane-dense output tile
    *,
    H,
):
    x0 = x_ref[0:1, :]          # (1, TN)
    x1 = x_ref[1:2, :]          # (1, TN)

    # Single broadcast-FMA pass for every x-fed (K=2) contraction + its bias:
    #   rows [0:H)       -> fc1 pre-activation        (w1  @ x + b1)
    #   rows [H:2H)      -> fc2's x-block partial     (w2x @ x + b2)
    #   row  [2H:2H+1)   -> fc3's x-block partial     (w3x @ x + b3)
    pre = wstk_ref[:, 0:1] * x0 + wstk_ref[:, 1:2] * x1 + bstk_ref[...]   # (Mstk, TN)

    h1 = jnp.tanh(pre[0:H, :])                                            # (H, TN)

    # Fused fc2 + fc3-h1 matmul on the MXU: rows [0:H) are w2h, row H is w3h1.
    d = jnp.dot(w23_ref[...], h1, preferred_element_type=jnp.float32)     # (H23, TN)

    h2 = jnp.tanh(d[0:H, :] + pre[H:2 * H, :])                            # (H, TN)

    z = (
        pre[2 * H:2 * H + 1, :]                                           # w3x @ x + b3
        + d[H:H + 1, :]                                                   # w3h1 @ h1
        + jnp.dot(w3h2_ref[...], h2, preferred_element_type=jnp.float32)  # w3h2 @ h2
    )
    out_ref[...] = jax.nn.sigmoid(z)                                      # (1, TN)


def _prepare_weights(params):
    """Stack / split the PyTorch-layout weights for the fused kernel."""
    H = params["w1"].shape[0]                 # fc1 weight is (H, 2), PyTorch (out, in)

    w2 = params["w2"]                         # (H, H + 2), columns ordered [h1 | x]
    w2h, w2x = w2[:, :H], w2[:, H:]
    w3 = params["w3"]                         # (1, 2H + 2), columns ordered [x | h1 | h2]
    w3x, w3h1, w3h2 = w3[:, :2], w3[:, 2:2 + H], w3[:, 2 + H:]

    # Merged broadcast-FMA operands: [w1 ; w2x ; w3x], [b1 ; b2 ; b3], zero-padded
    # to a multiple of 8 rows for sublane alignment.
    Mstk = _round_up(2 * H + 1, 8)
    wstk = jnp.zeros((Mstk, 2), jnp.float32)
    wstk = wstk.at[:H].set(params["w1"]).at[H:2 * H].set(w2x).at[2 * H:2 * H + 1].set(w3x)
    bstk = jnp.zeros((Mstk, 1), jnp.float32)
    bstk = (
        bstk.at[:H, 0].set(params["b1"])
        .at[H:2 * H, 0].set(params["b2"])
        .at[2 * H:2 * H + 1, 0].set(params["b3"])
    )

    # Fused fc2 / fc3-h1 matmul operand: [w2h ; w3h1], zero-padded to mult-of-8 rows.
    H23 = _round_up(H + 1, 8)
    w23 = jnp.zeros((H23, H), jnp.float32)
    w23 = w23.at[:H].set(w2h).at[H:H + 1].set(w3h1)

    return H, Mstk, H23, wstk, bstk, w23, w3h2


def _choose_tiling(N, tile_n):
    """Pick the lane-tile size and padded batch length."""
    n128 = _round_up(N, 128)
    tn = min(_round_up(tile_n, 128), n128)
    # v7x megacore: if a large batch would otherwise be a single grid step,
    # split it so dimension_semantics=("parallel",) can use both TensorCores.
    # (No effect on v5e/v6e beyond a negligible second step.)
    if n128 <= tn and n128 >= 2 * 1024:
        tn = _round_up(pl.cdiv(n128, 2), 128)
    n_pad = _round_up(n128, tn)
    return tn, n_pad


def shortnet_forward_t(x_t, params, *, tile_n=8192):
    """Forward pass on batch-on-lanes input. x_t: (2, N) f32. Returns (1, N) f32."""
    N = x_t.shape[1]
    H, Mstk, H23, wstk, bstk, w23, w3h2 = _prepare_weights(params)

    tn, n_pad = _choose_tiling(N, tile_n)
    x_p = jnp.pad(x_t, ((0, 0), (0, n_pad - N)))             # (2, n_pad)

    grid = (n_pad // tn,)

    in_specs = [
        pl.BlockSpec((2, tn), lambda i: (0, i)),              # x (tiled along batch)
        pl.BlockSpec((Mstk, 2), lambda i: (0, 0)),            # wstk (resident)
        pl.BlockSpec((Mstk, 1), lambda i: (0, 0)),            # bstk (resident)
        pl.BlockSpec((H23, H), lambda i: (0, 0)),             # w23  (resident)
        pl.BlockSpec((1, H), lambda i: (0, 0)),               # w3h2 (resident)
    ]
    out_specs = pl.BlockSpec((1, tn), lambda i: (0, i))

    out_t = pl.pallas_call(
        functools.partial(shortnet_kernel, H=H),
        out_shape=jax.ShapeDtypeStruct((1, n_pad), jnp.float32),
        grid=grid,
        in_specs=in_specs,
        out_specs=out_specs,
        compiler_params=pltpu.CompilerParams(
            dimension_semantics=("parallel",),
            # Explicit limit: v5e's default scoped VMEM is only 16 MiB; large
            # lane tiles (h1/h2/pre temporaries) need headroom.  Safe on all chips.
            vmem_limit_bytes=32 * 1024 * 1024,
        ),
    )(x_p, wstk, bstk, w23, w3h2)

    return out_t[:, :N]


def shortnet_forward(x, params, *, tile_n=8192):
    """Forward pass. x: (N, 2) float32. Returns (N, 1) float32 (matches PyTorch)."""
    # NOTE: this transpose is a standalone XLA copy; if the producer can emit x
    # in (2, N) layout, call shortnet_forward_t directly to avoid it.
    return shortnet_forward_t(x.T, params, tile_n=tile_n).T   # (N, 1)


def init_params(key, num_hid):
    """Deterministic synthetic init matching nn.Linear shapes (PyTorch (out, in) layout)."""
    ks = jax.random.split(key, 6)
    H = num_hid

    def lin(kw, kb, fan_in, fan_out):
        bound = 1.0 / jnp.sqrt(fan_in)
        w = jax.random.uniform(kw, (fan_out, fan_in), jnp.float32, -bound, bound)
        b = jax.random.uniform(kb, (fan_out,), jnp.float32, -bound, bound)
        return w, b

    w1, b1 = lin(ks[0], ks[1], 2, H)            # fc1: Linear(2, H)
    w2, b2 = lin(ks[2], ks[3], H + 2, H)        # fc2: Linear(H + 2, H)
    w3, b3 = lin(ks[4], ks[5], 2 * H + 2, 1)    # fc3: Linear(2H + 2, 1)
    return {"w1": w1, "b1": b1, "w2": w2, "b2": b2, "w3": w3, "b3": b3}


def shortnet_ref(x, params):
    """Pure-JAX reference mirroring the PyTorch forward exactly."""
    h1 = jnp.tanh(x @ params["w1"].T + params["b1"])
    h2 = jnp.tanh(jnp.concatenate([h1, x], axis=1) @ params["w2"].T + params["b2"])
    z = jnp.concatenate([x, h1, h2], axis=1) @ params["w3"].T + params["b3"]
    return jax.nn.sigmoid(z)


if __name__ == "__main__":
    key = jax.random.PRNGKey(0)
    k_x, k_x2, k_p = jax.random.split(key, 3)

    N, num_hid = 97, 32                      # spec's temp buffers imply batch 97
    x = jax.random.normal(k_x, (N, 2), dtype=jnp.float32)
    params = init_params(k_p, num_hid)

    out = shortnet_forward(x, params)
    out = jax.block_until_ready(out)
    ref = shortnet_ref(x, params)
    assert out.shape == (N, 1)
    assert jnp.allclose(out, ref, atol=1e-5, rtol=1e-5)

    # Exercise the multi-tile (grid > 1) path with padding on a small shape.
    N2 = 300
    x2 = jax.random.normal(k_x2, (N2, 2), dtype=jnp.float32)
    out2 = jax.block_until_ready(shortnet_forward(x2, params, tile_n=128))
    ref2 = shortnet_ref(x2, params)
    assert out2.shape == (N2, 1)
    assert jnp.allclose(out2, ref2, atol=1e-5, rtol=1e-5)

    print("KERNEL_OK")
</pallas_src>

<mosaic_0001>
module attributes {stable_mosaic.version = 11 : i64} {
  func.func @shortnet_kernel(%arg0: i32, %arg1: memref<2x128xf32, #tpu.memory_space<vmem>>, %arg2: memref<72x2xf32, #tpu.memory_space<vmem>>, %arg3: memref<72x1xf32, #tpu.memory_space<vmem>>, %arg4: memref<40x32xf32, #tpu.memory_space<vmem>>, %arg5: memref<1x32xf32, #tpu.memory_space<vmem>>, %arg6: memref<1x128xf32, #tpu.memory_space<vmem>>) attributes {dimension_semantics = [#tpu.dimension_semantics<parallel>], iteration_bounds = array<i64: 1>, scalar_prefetch = 0 : i64, scratch_operands = 0 : i64, tpu.core_type = #tpu.core_type<tc>, window_params = [{transform_indices = @transform_0, window_bounds = array<i64: 2, 128>}, {pipeline_mode = #tpu.pipeline_mode<synchronous>, transform_indices = @transform_1, window_bounds = array<i64: 72, 2>}, {pipeline_mode = #tpu.pipeline_mode<synchronous>, transform_indices = @transform_2, window_bounds = array<i64: 72, 1>}, {pipeline_mode = #tpu.pipeline_mode<synchronous>, transform_indices = @transform_3, window_bounds = array<i64: 40, 32>}, {pipeline_mode = #tpu.pipeline_mode<synchronous>, transform_indices = @transform_4, window_bounds = array<i64: 1, 32>}, {transform_indices = @transform_5, window_bounds = array<i64: 1, 128>}]} {
    %c0 = arith.constant 0 : index
    %c0_0 = arith.constant 0 : index
    %0 = vector.load %arg1[%c0, %c0_0] : memref<2x128xf32, #tpu.memory_space<vmem>>, vector<1x128xf32>
    %c1 = arith.constant 1 : index
    %c0_1 = arith.constant 0 : index
    %1 = vector.load %arg1[%c1, %c0_1] : memref<2x128xf32, #tpu.memory_space<vmem>>, vector<1x128xf32>
    %c0_2 = arith.constant 0 : index
    %c0_3 = arith.constant 0 : index
    %2 = vector.load %arg2[%c0_2, %c0_3] : memref<72x2xf32, #tpu.memory_space<vmem>>, vector<72x1xf32>
    %3 = vector.broadcast %2 : vector<72x1xf32> to vector<72x128xf32>
    %4 = vector.broadcast %0 : vector<1x128xf32> to vector<72x128xf32>
    %5 = arith.mulf %3, %4 : vector<72x128xf32>
    %c0_4 = arith.constant 0 : index
    %c1_5 = arith.constant 1 : index
    %6 = vector.load %arg2[%c0_4, %c1_5] : memref<72x2xf32, #tpu.memory_space<vmem>>, vector<72x1xf32>
    %7 = vector.broadcast %6 : vector<72x1xf32> to vector<72x128xf32>
    %8 = vector.broadcast %1 : vector<1x128xf32> to vector<72x128xf32>
    %9 = arith.mulf %7, %8 : vector<72x128xf32>
    %10 = arith.addf %5, %9 : vector<72x128xf32>
    %c0_6 = arith.constant 0 : index
    %c0_7 = arith.constant 0 : index
    %11 = vector.load %arg3[%c0_6, %c0_7] : memref<72x1xf32, #tpu.memory_space<vmem>>, vector<72x1xf32>
    %12 = vector.broadcast %11 : vector<72x1xf32> to vector<72x128xf32>
    %13 = arith.addf %10, %12 : vector<72x128xf32>
    %14 = vector.extract_strided_slice %13 {offsets = [0, 0], sizes = [32, 128], strides = [1, 1]} : vector<72x128xf32> to vector<32x128xf32>
    %15 = math.tanh %14 : vector<32x128xf32>
    %c0_8 = arith.constant 0 : index
    %c0_9 = arith.constant 0 : index
    %16 = vector.load %arg4[%c0_8, %c0_9] : memref<40x32xf32, #tpu.memory_space<vmem>>, vector<40x32xf32>
    %cst = arith.constant dense<0.000000e+00> : vector<40x128xf32>
    %17 = tpu.matmul %16, %15, %cst {dimension_numbers = #tpu.dot_dimension_numbers<[1], [0], [0], [1], [0, 0, 1, 1], [], []>} : vector<40x32xf32>, vector<32x128xf32>, vector<40x128xf32> -> vector<40x128xf32>
    %18 = vector.extract_strided_slice %17 {offsets = [0, 0], sizes = [32, 128], strides = [1, 1]} : vector<40x128xf32> to vector<32x128xf32>
    %19 = vector.extract_strided_slice %13 {offsets = [32, 0], sizes = [32, 128], strides = [1, 1]} : vector<72x128xf32> to vector<32x128xf32>
    %20 = arith.addf %18, %19 : vector<32x128xf32>
    %21 = math.tanh %20 : vector<32x128xf32>
    %22 = vector.extract_strided_slice %13 {offsets = [64, 0], sizes = [1, 128], strides = [1, 1]} : vector<72x128xf32> to vector<1x128xf32>
    %23 = vector.extract_strided_slice %17 {offsets = [32, 0], sizes = [1, 128], strides = [1, 1]} : vector<40x128xf32> to vector<1x128xf32>
    %24 = arith.addf %22, %23 : vector<1x128xf32>
    %c0_10 = arith.constant 0 : index
    %c0_11 = arith.constant 0 : index
    %25 = vector.load %arg5[%c0_10, %c0_11] : memref<1x32xf32, #tpu.memory_space<vmem>>, vector<1x32xf32>
    %cst_12 = arith.constant dense<0.000000e+00> : vector<1x128xf32>
    %26 = tpu.matmul %25, %21, %cst_12 {dimension_numbers = #tpu.dot_dimension_numbers<[1], [0], [0], [1], [0, 0, 1, 1], [], []>} : vector<1x32xf32>, vector<32x128xf32>, vector<1x128xf32> -> vector<1x128xf32>
    %27 = arith.addf %24, %26 : vector<1x128xf32>
    %28 = arith.negf %27 : vector<1x128xf32>
    %29 = math.exp %28 : vector<1x128xf32>
    %cst_13 = arith.constant 1.000000e+00 : f32
    %30 = vector.broadcast %cst_13 : f32 to vector<1x128xf32>
    %31 = arith.addf %30, %29 : vector<1x128xf32>
    %32 = arith.divf %30, %31 : vector<1x128xf32>
    %c0_14 = arith.constant 0 : index
    %c0_15 = arith.constant 0 : index
    %33 = vector.load %arg6[%c0_14, %c0_15] : memref<1x128xf32, #tpu.memory_space<vmem>>, vector<1x128xf32>
    tpu.vector_store %arg6[%c0_14, %c0_15], %32 {strides = array<i32>} : memref<1x128xf32, #tpu.memory_space<vmem>>, vector<1x128xf32>,
    return
  }
  func.func @transform_0(%arg0: i32) -> (i32, i32) {
    %c0_i32 = arith.constant 0 : i32
    %c0_i32_0 = arith.constant 0 : i32
    return %c0_i32, %arg0 : i32, i32
  }
  func.func @transform_1(%arg0: i32) -> (i32, i32) {
    %c0_i32 = arith.constant 0 : i32
    %c0_i32_0 = arith.constant 0 : i32
    %c0_i32_1 = arith.constant 0 : i32
    return %c0_i32, %c0_i32_0 : i32, i32
  }
  func.func @transform_2(%arg0: i32) -> (i32, i32) {
    %c0_i32 = arith.constant 0 : i32
    %c0_i32_0 = arith.constant 0 : i32
    %c0_i32_1 = arith.constant 0 : i32
    return %c0_i32, %c0_i32_0 : i32, i32
  }
  func.func @transform_3(%arg0: i32) -> (i32, i32) {
    %c0_i32 = arith.constant 0 : i32
    %c0_i32_0 = arith.constant 0 : i32
    %c0_i32_1 = arith.constant 0 : i32
    return %c0_i32, %c0_i32_0 : i32, i32
  }
  func.func @transform_4(%arg0: i32) -> (i32, i32) {
    %c0_i32 = arith.constant 0 : i32
    %c0_i32_0 = arith.constant 0 : i32
    %c0_i32_1 = arith.constant 0 : i32
    return %c0_i32, %c0_i32_0 : i32, i32
  }
  func.func @transform_5(%arg0: i32) -> (i32, i32) {
    %c0_i32 = arith.constant 0 : i32
    %c0_i32_0 = arith.constant 0 : i32
    return %c0_i32, %arg0 : i32, i32
  }
}

</mosaic_0001>

<llo_original>
// kernel: tpu_custom_call.1
$region0: #{tpu_custom_call.1}
  #allocation0 [shape = 'u32[]', space=smem, size = 0x4, offset = 0x4, fixed_abs, tag = 'smem constant byte address 0x4 - core index']
  #allocation1 [shape = 'u32[144,128]{1,0:T(1,128)}', space=vmem, size = 0x12000, scoped, tag = 'internal scratch']
  %s0 = inlined_call_operand.vmem [shape: f32[2,128], index: 0, kind: input, shape index: {}]
  %s1 = inlined_call_operand.vmem [shape: f32[72,2], index: 1, kind: input, shape index: {}]
  %s2 = inlined_call_operand.vmem [shape: f32[72,1], index: 2, kind: input, shape index: {}]
  %s3 = inlined_call_operand.vmem [shape: f32[40,32], index: 3, kind: input, shape index: {}]
  %s4 = inlined_call_operand.vmem [shape: f32[1,32], index: 4, kind: input, shape index: {}]
  %s5 = inlined_call_operand.hbm [shape: f32[1,128], index: 5, kind: output, shape index: {}]
  %s6 = sld [smem:[#allocation0]]
  $region30: #{tpu_custom_call.1} parent=0
    _
  %s8 = ssub.s32 1, %s6
  %s9 = scalar_select 0, %s8, %s6
  $region1: #{tpu_custom_call.1} parent=0
    #allocation2 [shape = 'u8[512]{0}', space=vmem, size = 0x400, scoped, tag = 'output window, operand 0, single buffered']
    #allocation3 [shape = 's32[1]{0}', space=sflag, size = 0x4, scoped, tag = 'scoped memory for tpu_custom_call.1']
    %10 = vsyncpa [#allocation3], 0
    // Predicated region
    $region2: #{tpu_custom_call.1} parent=1 // pred_check
      _
    $region3: #{tpu_custom_call.1} parent=1 // pred_check_branch
      %12 = sbr.rel (0) target = $region5
    $region4: #{tpu_custom_call.1} parent=1 // pred_region
      _
    $region5: #{tpu_custom_call.1} parent=1 // pred_fallthru
      _
    // Predicated region
    $region6: #{tpu_custom_call.1} parent=1 // pred_check
      _
    $region7: #{tpu_custom_call.1} parent=1 // pred_check_branch
      %14 = sbr.rel (0) target = $region9
    $region8: #{tpu_custom_call.1} parent=1 // pred_region
      _
    $region9: #{tpu_custom_call.1} parent=1 // pred_fallthru
      _
    // Predicated region
    $region10: #{tpu_custom_call.1} parent=1 // pred_check
      _
    $region11: #{tpu_custom_call.1} parent=1 // pred_check_branch
      %16 = sbr.rel (0) target = $region13
    $region12: #{tpu_custom_call.1} parent=1 // pred_region
      _
    $region13: #{tpu_custom_call.1} parent=1 // pred_fallthru
      _
    // Predicated region
    $region14: #{tpu_custom_call.1} parent=1 // pred_check
      _
    $region15: #{tpu_custom_call.1} parent=1 // pred_check_branch
      %18 = sbr.rel (0) target = $region17
    $region16: #{tpu_custom_call.1} parent=1 // pred_region
      _
    $region17: #{tpu_custom_call.1} parent=1 // pred_fallthru
      _
    // Predicated region
    $region18: #{tpu_custom_call.1} parent=1 // pred_check
      _
    $region19: #{tpu_custom_call.1} parent=1 // pred_check_branch
      %20 = sbr.rel (0) target = $region21
    $region20: #{tpu_custom_call.1} parent=1 // pred_region
      _
    $region21: #{tpu_custom_call.1} parent=1 // pred_fallthru
      _
    %v21 = vld [vmem:[%s0] sm:$0x1]
    %v22 = vld [vmem:[%s0 + $0x1] sm:$0x1]
    %v23 = vld [vmem:[%s1] sm:$0xff]
    %v24 = vld [vmem:[%s1 + $0x8] sm:$0xff]
    %v25 = vld [vmem:[%s1 + $0x10] sm:$0xff]
    %v26 = vld [vmem:[%s1 + $0x18] sm:$0xff]
    %v27 = vld [vmem:[%s1 + $0x20] sm:$0xff]
    %v28 = vld [vmem:[%s1 + $0x28] sm:$0xff]
    %v29 = vld [vmem:[%s1 + $0x30] sm:$0xff]
    %v30 = vld [vmem:[%s1 + $0x38] sm:$0xff]
    %v31 = vld [vmem:[%s1 + $0x40] sm:$0xff]
    %33 = vset.pattern.permute.xlu0 0
    %34 = vperm.xlu0 %33, %v23
    %v35 = vpop.permute.xlu0 %34
    %38 = vset.pattern.permute.xlu0 0
    %39 = vperm.xlu0 %38, %v24
    %v40 = vpop.permute.xlu0 %39
    %43 = vset.pattern.permute.xlu0 0
    %44 = vperm.xlu0 %43, %v25
    %v45 = vpop.permute.xlu0 %44
    %48 = vset.pattern.permute.xlu0 0
    %49 = vperm.xlu0 %48, %v26
    %v50 = vpop.permute.xlu0 %49
    %53 = vset.pattern.permute.xlu0 0
    %54 = vperm.xlu0 %53, %v27
    %v55 = vpop.permute.xlu0 %54
    %58 = vset.pattern.permute.xlu0 0
    %59 = vperm.xlu0 %58, %v28
    %v60 = vpop.permute.xlu0 %59
    %63 = vset.pattern.permute.xlu0 0
    %64 = vperm.xlu0 %63, %v29
    %v65 = vpop.permute.xlu0 %64
    %68 = vset.pattern.permute.xlu0 0
    %69 = vperm.xlu0 %68, %v30
    %v70 = vpop.permute.xlu0 %69
    %73 = vset.pattern.permute.xlu0 0
    %74 = vperm.xlu0 %73, %v31
    %v75 = vpop.permute.xlu0 %74
    %v77 = vlaneseq
    %v78 = vshrl.u32 %v77, 7
    %v79 = vsub.s32 0, %v78
    %v80 = vrot.slane %v21, %v79
    %v81 = vmul.f32 %v35, %v80
    %v82 = vmul.f32 %v40, %v80
    %v83 = vmul.f32 %v45, %v80
    %v84 = vmul.f32 %v50, %v80
    %v85 = vmul.f32 %v55, %v80
    %v86 = vmul.f32 %v60, %v80
    %v87 = vmul.f32 %v65, %v80
    %v88 = vmul.f32 %v70, %v80
    %v89 = vmul.f32 %v75, %v80
    %90 = vset.pattern.permute.xlu0 1
    %91 = vperm.xlu0 %90, %v23
    %v92 = vpop.permute.xlu0 %91
    %94 = vset.pattern.permute.xlu0 1
    %95 = vperm.xlu0 %94, %v24
    %v96 = vpop.permute.xlu0 %95
    %98 = vset.pattern.permute.xlu0 1
    %99 = vperm.xlu0 %98, %v25
    %v100 = vpop.permute.xlu0 %99
    %102 = vset.pattern.permute.xlu0 1
    %103 = vperm.xlu0 %102, %v26
    %v104 = vpop.permute.xlu0 %103
    %106 = vset.pattern.permute.xlu0 1
    %107 = vperm.xlu0 %106, %v27
    %v108 = vpop.permute.xlu0 %107
    %110 = vset.pattern.permute.xlu0 1
    %111 = vperm.xlu0 %110, %v28
    %v112 = vpop.permute.xlu0 %111
    %114 = vset.pattern.permute.xlu0 1
    %115 = vperm.xlu0 %114, %v29
    %v116 = vpop.permute.xlu0 %115
    %118 = vset.pattern.permute.xlu0 1
    %119 = vperm.xlu0 %118, %v30
    %v120 = vpop.permute.xlu0 %119
    %122 = vset.pattern.permute.xlu0 1
    %123 = vperm.xlu0 %122, %v31
    %v124 = vpop.permute.xlu0 %123
    %v126 = vlaneseq
    %v127 = vshrl.u32 %v126, 7
    %v128 = vsub.s32 0, %v127
    %v129 = vrot.slane %v22, %v128
    %v130 = vmul.f32 %v92, %v129
    %v131 = vmul.f32 %v96, %v129
    %v132 = vmul.f32 %v100, %v129
    %v133 = vmul.f32 %v104, %v129
    %v134 = vmul.f32 %v108, %v129
    %v135 = vmul.f32 %v112, %v129
    %v136 = vmul.f32 %v116, %v129
    %v137 = vmul.f32 %v120, %v129
    %v138 = vmul.f32 %v124, %v129
    %v139 = vadd.f32 %v81, %v130
    %v140 = vadd.f32 %v82, %v131
    %v141 = vadd.f32 %v83, %v132
    %v142 = vadd.f32 %v84, %v133
    %v143 = vadd.f32 %v85, %v134
    %v144 = vadd.f32 %v86, %v135
    %v145 = vadd.f32 %v87, %v136
    %v146 = vadd.f32 %v88, %v137
    %v147 = vadd.f32 %v89, %v138
    %v148 = vld [vmem:[%s2] sm:$0xff]
    %v149 = vld [vmem:[%s2 + $0x8] sm:$0xff]
    %v150 = vld [vmem:[%s2 + $0x10] sm:$0xff]
    %v151 = vld [vmem:[%s2 + $0x18] sm:$0xff]
    %v152 = vld [vmem:[%s2 + $0x20] sm:$0xff]
    %v153 = vld [vmem:[%s2 + $0x28] sm:$0xff]
    %v154 = vld [vmem:[%s2 + $0x30] sm:$0xff]
    %v155 = vld [vmem:[%s2 + $0x38] sm:$0xff]
    %v156 = vld [vmem:[%s2 + $0x40] sm:$0xff]
    %158 = vset.pattern.permute.xlu0 0
    %159 = vperm.xlu0 %158, %v148
    %v160 = vpop.permute.xlu0 %159
    %163 = vset.pattern.permute.xlu0 0
    %164 = vperm.xlu0 %163, %v149
    %v165 = vpop.permute.xlu0 %164
    %168 = vset.pattern.permute.xlu0 0
    %169 = vperm.xlu0 %168, %v150
    %v170 = vpop.permute.xlu0 %169
    %173 = vset.pattern.permute.xlu0 0
    %174 = vperm.xlu0 %173, %v151
    %v175 = vpop.permute.xlu0 %174
    %178 = vset.pattern.permute.xlu0 0
    %179 = vperm.xlu0 %178, %v152
    %v180 = vpop.permute.xlu0 %179
    %183 = vset.pattern.permute.xlu0 0
    %184 = vperm.xlu0 %183, %v153
    %v185 = vpop.permute.xlu0 %184
    %188 = vset.pattern.permute.xlu0 0
    %189 = vperm.xlu0 %188, %v154
    %v190 = vpop.permute.xlu0 %189
    %193 = vset.pattern.permute.xlu0 0
    %194 = vperm.xlu0 %193, %v155
    %v195 = vpop.permute.xlu0 %194
    %198 = vset.pattern.permute.xlu0 0
    %199 = vperm.xlu0 %198, %v156
    %v200 = vpop.permute.xlu0 %199
    %v202 = vadd.f32 %v139, %v160
    %v203 = vadd.f32 %v140, %v165
    %v204 = vadd.f32 %v141, %v170
    %v205 = vadd.f32 %v142, %v175
    %v206 = vadd.f32 %v143, %v180
    %v207 = vadd.f32 %v144, %v185
    %v208 = vadd.f32 %v145, %v190
    %v209 = vadd.f32 %v146, %v195
    %v210 = vadd.f32 %v147, %v200
    %v211 = vtanh.pop %v202
    %v212 = vtanh.pop %v203
    %v213 = vtanh.pop %v204
    %v214 = vtanh.pop %v205
    %v215 = vld [vmem:[%s3] sm:$0xff]
    %v216 = vld [vmem:[%s3 + $0x8] sm:$0xff]
    %v217 = vld [vmem:[%s3 + $0x10] sm:$0xff]
    %v218 = vld [vmem:[%s3 + $0x18] sm:$0xff]
    %v219 = vld [vmem:[%s3 + $0x20] sm:$0xff]
    %vm220 = vcmask 261120
    %v222 = vsel %vm220, %v215, 0
    %v225 = vsel %vm220, %v216, 0
    %v228 = vsel %vm220, %v217, 0
    %v231 = vsel %vm220, %v218, 0
    %v234 = vsel %vm220, %v219, 0
    %236 = vmatprep.subr.mxu0 0.0
    %237 = vmatpush1.msra.mxu0 %v211
    %238 = vmatprep.subr.mxu0 0.0
    %239 = vmatpush1.msra.mxu0 %v212
    %240 = vmatprep.subr.mxu0 0.0
    %241 = vmatpush1.msra.mxu0 %v213
    %242 = vmatprep.subr.mxu0 0.0
    %243 = vmatpush1.msra.mxu0 %v214
    %244 = vmatprep.subr.mxu0 0.0
    %245 = vmatpush1.msra.mxu0 0.0
    %246 = vmatprep.subr.mxu0 0.0
    %247 = vmatpush1.msra.mxu0 0.0
    %248 = vmatprep.subr.mxu0 0.0
    %249 = vmatpush1.msra.mxu0 0.0
    %250 = vmatprep.subr.mxu0 0.0
    %251 = vmatpush1.msra.mxu0 0.0
    %252 = vmatprep.subr.mxu0 0.0
    %253 = vmatpush1.msra.mxu0 0.0
    %254 = vmatprep.subr.mxu0 0.0
    %255 = vmatpush1.msra.mxu0 0.0
    %256 = vmatprep.subr.mxu0 0.0
    %257 = vmatpush1.msra.mxu0 0.0
    %258 = vmatprep.subr.mxu0 0.0
    %259 = vmatpush1.msra.mxu0 0.0
    %260 = vmatprep.subr.mxu0 0.0
    %261 = vmatpush1.msra.mxu0 0.0
    %262 = vmatprep.subr.mxu0 0.0
    %263 = vmatpush1.msra.mxu0 0.0
    %264 = vmatprep.subr.mxu0 0.0
    %265 = vmatpush1.msra.mxu0 0.0
    %266 = vmatprep.subr.mxu0 0.0
    %267 = vmatpush1.msra.mxu0 0.0
    %268 = vmatprep.subr.mxu0 0.0
    %269 = vmatpush1.msra.mxu0 0.0
    %270 = vmatprep.subr.mxu0 0.0
    %271 = vmatpush1.msra.mxu0 0.0
    %272 = vmatprep.subr.mxu0 0.0
    %273 = vmatpush1.msra.mxu0 0.0
    %274 = vmatprep.subr.mxu0 0.0
    %275 = vmatpush1.msra.mxu0 0.0
    %276 = vmatprep.subr.mxu0 0.0
    %277 = vmatpush1.msra.mxu0 0.0
    %278 = vmatprep.subr.mxu0 0.0
    %279 = vmatpush1.msra.mxu0 0.0
    %280 = vmatprep.subr.mxu0 0.0
    %281 = vmatpush1.msra.mxu0 0.0
    %282 = vmatprep.subr.mxu0 0.0
    %283 = vmatpush1.msra.mxu0 0.0
    %284 = vmatprep.subr.mxu0 0.0
    %285 = vmatpush1.msra.mxu0 0.0
    %286 = vmatprep.subr.mxu0 0.0
    %287 = vmatpush1.msra.mxu0 0.0
    %288 = vmatprep.subr.mxu0 0.0
    %289 = vmatpush1.msra.mxu0 0.0
    %290 = vmatprep.subr.mxu0 0.0
    %291 = vmatpush1.msra.mxu0 0.0
    %292 = vmatprep.subr.mxu0 0.0
    %293 = vmatpush1.msra.mxu0 0.0
    %294 = vmatprep.subr.mxu0 0.0
    %295 = vmatpush1.msra.mxu0 0.0
    %296 = vmatprep.subr.mxu0 0.0
    %297 = vmatpush1.msra.mxu0 0.0
    %298 = vmatprep.subr.mxu0 0.0
    %299 = vmatpush1.msra.mxu0 0.0
    %300 = vmatprep.mubr.f32.mxu0 0.0
    %301 = vmatmul.mubr.f32.gmra.mrb[0].mxu0 %v222
    %v302 = vpop.f32.mrb[0].mxu0
    %v303 = vadd.f32 0.0, %v302
    %v304 = vpop.f32.mrb[0].mxu0
    %305 = vmatprep.mubr.f32.mxu0 0.0
    %306 = vmatmul.mubr.f32.gmra.mrb[0].mxu0 %v225
    %v307 = vpop.f32.mrb[0].mxu0
    %v308 = vadd.f32 0.0, %v307
    %v309 = vpop.f32.mrb[0].mxu0
    %310 = vmatprep.mubr.f32.mxu0 0.0
    %311 = vmatmul.mubr.f32.gmra.mrb[0].mxu0 %v228
    %v312 = vpop.f32.mrb[0].mxu0
    %v313 = vadd.f32 0.0, %v312
    %v314 = vpop.f32.mrb[0].mxu0
    %315 = vmatprep.mubr.f32.mxu0 0.0
    %316 = vmatmul.mubr.f32.gmra.mrb[0].mxu0 %v231
    %v317 = vpop.f32.mrb[0].mxu0
    %v318 = vadd.f32 0.0, %v317
    %v319 = vpop.f32.mrb[0].mxu0
    %320 = vmatprep.mubr.f32.mxu0 0.0
    %321 = vmatmul.mubr.f32.gmra.mrb[0].mxu0 %v234
    %v322 = vpop.f32.mrb[0].mxu0
    %v323 = vadd.f32 0.0, %v322
    %v324 = vpop.f32.mrb[0].mxu0
    %325 = vdwg.mxu0
    %v326 = vadd.f32 %v303, %v206
    %v327 = vadd.f32 %v308, %v207
    %v328 = vadd.f32 %v313, %v208
    %v329 = vadd.f32 %v318, %v209
    %v330 = vtanh.pop %v326
    %v331 = vtanh.pop %v327
    %v332 = vtanh.pop %v328
    %v333 = vtanh.pop %v329
    %v334 = vadd.f32 %v210, %v323
    %v335 = vld [vmem:[%s4] sm:$0x1]
    %v337 = vsel %vm220, %v335, 0
    %339 = vmatprep.subr.mxu0 0.0
    %340 = vmatpush1.msra.mxu0 %v330
    %341 = vmatprep.subr.mxu0 0.0
    %342 = vmatpush1.msra.mxu0 %v331
    %343 = vmatprep.subr.mxu0 0.0
    %344 = vmatpush1.msra.mxu0 %v332
    %345 = vmatprep.subr.mxu0 0.0
    %346 = vmatpush1.msra.mxu0 %v333
    %347 = vmatprep.subr.mxu0 0.0
    %348 = vmatpush1.msra.mxu0 0.0
    %349 = vmatprep.subr.mxu0 0.0
    %350 = vmatpush1.msra.mxu0 0.0
    %351 = vmatprep.subr.mxu0 0.0
    %352 = vmatpush1.msra.mxu0 0.0
    %353 = vmatprep.subr.mxu0 0.0
    %354 = vmatpush1.msra.mxu0 0.0
    %355 = vmatprep.subr.mxu0 0.0
    %356 = vmatpush1.msra.mxu0 0.0
    %357 = vmatprep.subr.mxu0 0.0
    %358 = vmatpush1.msra.mxu0 0.0
    %359 = vmatprep.subr.mxu0 0.0
    %360 = vmatpush1.msra.mxu0 0.0
    %361 = vmatprep.subr.mxu0 0.0
    %362 = vmatpush1.msra.mxu0 0.0
    %363 = vmatprep.subr.mxu0 0.0
    %364 = vmatpush1.msra.mxu0 0.0
    %365 = vmatprep.subr.mxu0 0.0
    %366 = vmatpush1.msra.mxu0 0.0
    %367 = vmatprep.subr.mxu0 0.0
    %368 = vmatpush1.msra.mxu0 0.0
    %369 = vmatprep.subr.mxu0 0.0
    %370 = vmatpush1.msra.mxu0 0.0
    %371 = vmatprep.subr.mxu0 0.0
    %372 = vmatpush1.msra.mxu0 0.0
    %373 = vmatprep.subr.mxu0 0.0
    %374 = vmatpush1.msra.mxu0 0.0
    %375 = vmatprep.subr.mxu0 0.0
    %376 = vmatpush1.msra.mxu0 0.0
    %377 = vmatprep.subr.mxu0 0.0
    %378 = vmatpush1.msra.mxu0 0.0
    %379 = vmatprep.subr.mxu0 0.0
    %380 = vmatpush1.msra.mxu0 0.0
    %381 = vmatprep.subr.mxu0 0.0
    %382 = vmatpush1.msra.mxu0 0.0
    %383 = vmatprep.subr.mxu0 0.0
    %384 = vmatpush1.msra.mxu0 0.0
    %385 = vmatprep.subr.mxu0 0.0
    %386 = vmatpush1.msra.mxu0 0.0
    %387 = vmatprep.subr.mxu0 0.0
    %388 = vmatpush1.msra.mxu0 0.0
    %389 = vmatprep.subr.mxu0 0.0
    %390 = vmatpush1.msra.mxu0 0.0
    %391 = vmatprep.subr.mxu0 0.0
    %392 = vmatpush1.msra.mxu0 0.0
    %393 = vmatprep.subr.mxu0 0.0
    %394 = vmatpush1.msra.mxu0 0.0
    %395 = vmatprep.subr.mxu0 0.0
    %396 = vmatpush1.msra.mxu0 0.0
    %397 = vmatprep.subr.mxu0 0.0
    %398 = vmatpush1.msra.mxu0 0.0
    %399 = vmatprep.subr.mxu0 0.0
    %400 = vmatpush1.msra.mxu0 0.0
    %401 = vmatprep.subr.mxu0 0.0
    %402 = vmatpush1.msra.mxu0 0.0
    %403 = vmatprep.mubr.f32.mxu0 0.0
    %404 = vmatmul.mubr.f32.gmra.mrb[0].mxu0 %v337
    %v405 = vpop.f32.mrb[0].mxu0
    %v406 = vadd.f32 0.0, %v405
    %v407 = vpop.f32.mrb[0].mxu0
    %408 = vdwg.mxu0
    %v409 = vadd.f32 %v334, %v406
    %v410 = vxor.u32 %v409, 2147483648
    %v411 = vmul.f32 %v410, 1.442695
    %v412 = vpow.pop %v411
    %v413 = vadd.f32 %v412, 1.0
    %v414 = vrcp.pop %v413
    %v415 = vmul.f32 1.0, %v414
    %416 = vst [vmem:[#allocation2] sm:$0x1] %v415
    // Predicated region
    $region22: #{tpu_custom_call.1} parent=1 // pred_check
      _
    $region23: #{tpu_custom_call.1} parent=1 // pred_check_branch
      %418 = sbr.rel (0) target = $region25
    $region24: #{tpu_custom_call.1} parent=1 // pred_region
      %s420 = ssub.s32 16, 16
      %421 = vsyncadd [#allocation3], %s420
      %s423 = sshll.u32 [#allocation2], 4
      %s424 = int_to_ptr.vmem [resolvable:$true] %s423
      %426 = dma.vmem_to_hbm [thread:$0]  %s424, 16, %s5, [#allocation3]
    $region25: #{tpu_custom_call.1} parent=1 // pred_fallthru
      _
    // Predicated region
    $region26: #{tpu_custom_call.1} parent=1 // pred_check
      _
    $region27: #{tpu_custom_call.1} parent=1 // pred_check_branch
      %428 = sbr.rel (0) target = $region29
    $region28: #{tpu_custom_call.1} parent=1 // pred_region
      %429 = dma.done [#allocation3], 16
    $region29: #{tpu_custom_call.1} parent=1 // pred_fallthru
      _
    %430 = vsyncpa [#allocation3], 1

</llo_original>
